<compile_context>
chip_gen: v5e
topology: v5e:2x2
jax: 0.10.0
libtpu: 0.0.40
codegen_flags: <defaults>
</compile_context>

<pallas_src>
import functools

import jax
import jax.numpy as jnp
from jax.experimental import pallas as pl
from jax.experimental.pallas import tpu as pltpu

ALPHA = 1.0  # matches Elman(..., alpha=1.0)


def _round_up(x, m):
    return (x + m - 1) // m * m


def _elman_seq_kernel(x_ref, u0_ref, w_in_ref, w_ref, b_ref,
                      r_ref, u_out_ref, u_state, *, alpha):
    """One grid step = one timestep for one batch tile.

    x_ref    : (1, b_tile, in_p)   matmul dtype, streamed per step
    u0_ref   : (b_tile, hid_p)     f32, resident (constant index over t)
    w_in_ref : (in_p,  hid_p)      matmul dtype, resident
    w_ref    : (hid_p, hid_p)      matmul dtype, resident
    b_ref    : (1, hid_p)          f32, resident
    r_ref    : (1, b_tile, hid_p)  f32, streamed out per step
    u_out_ref: (b_tile, hid_p)     f32, resident; written on the last step
    u_state  : (b_tile, hid_p)     f32 VMEM scratch holding the recurrent state
    """
    t = pl.program_id(1)

    @pl.when(t == 0)
    def _():
        u_state[...] = u0_ref[...]

    mx_dtype = w_ref.dtype
    x_t = x_ref[0]                              # (b_tile, in_p)
    u_mx = u_state[...].astype(mx_dtype)        # cheap per-step cast; weights stay narrow

    # Two MXU matmuls with f32 accumulation. The (1, hid) bias add is a single
    # VPU add with a register-level sublane splat (no per-step broadcast
    # materialization inside a Python loop -- the grid body is traced once).
    pre = (jnp.dot(u_mx, w_ref[...], preferred_element_type=jnp.float32)
           + jnp.dot(x_t, w_in_ref[...], preferred_element_type=jnp.float32)
           + b_ref[...])

    r = jnp.maximum(jnp.tanh(pre), 0.0)         # sigma = relu(tanh(.)), f32 (EUP + VPU)

    if alpha == 1.0:                            # trace-time specialization
        u_state[...] = r
    else:
        u_state[...] = (1.0 - alpha) * u_state[...] + alpha * r

    r_ref[0] = r.astype(r_ref.dtype)

    @pl.when(t == pl.num_programs(1) - 1)
    def _():
        u_out_ref[...] = u_state[...].astype(u_out_ref.dtype)


def elman_sequence(x_seq, u0, w_in, w, b, *, alpha=ALPHA,
                   matmul_dtype=jnp.bfloat16, b_tile=None):
    """Runs T Elman steps in a single pallas_call. Returns (r_seq, u_final)."""
    T, B, in_size = x_seq.shape
    hid_size = w.shape[0]
    assert u0.shape == (B, hid_size)
    assert w_in.shape == (in_size, hid_size)
    assert w.shape == (hid_size, hid_size)

    mx_dtype = jnp.dtype(matmul_dtype)
    sub = 16 if mx_dtype.itemsize == 2 else 8          # sublane multiple
    Bp = _round_up(B, sub)
    in_p = _round_up(in_size, 128)                     # lane-dense K for x @ W_in
    hid_p = _round_up(hid_size, 128)                   # lane-dense N -> unmasked vst

    if b_tile is None:
        b_tile = Bp                                    # single batch tile at small B
    assert Bp % b_tile == 0 and b_tile % sub == 0
    nb = Bp // b_tile

    # Zero-pad in the wrapper; padded weight/bias entries are zero so padded
    # hidden lanes stay exactly zero through the recurrence -> slicing is exact.
    x_p = jnp.zeros((T, Bp, in_p), mx_dtype).at[:, :B, :in_size].set(
        x_seq.astype(mx_dtype))
    u_p = jnp.zeros((Bp, hid_p), jnp.float32).at[:B, :hid_size].set(
        u0.astype(jnp.float32))
    w_in_p = jnp.zeros((in_p, hid_p), mx_dtype).at[:in_size, :hid_size].set(
        w_in.astype(mx_dtype))
    w_p = jnp.zeros((hid_p, hid_p), mx_dtype).at[:hid_size, :hid_size].set(
        w.astype(mx_dtype))
    b_p = jnp.zeros((1, hid_p), jnp.float32).at[0, :hid_size].set(
        b.reshape(-1).astype(jnp.float32))

    kernel = functools.partial(_elman_seq_kernel, alpha=float(alpha))

    itm = mx_dtype.itemsize
    flops = 2 * T * Bp * (in_p + hid_p) * hid_p
    bytes_accessed = (x_p.size * itm + w_in_p.size * itm + w_p.size * itm
                      + b_p.size * 4 + u_p.size * 4
                      + T * Bp * hid_p * 4 + Bp * hid_p * 4)
    # Resident weights/bias/state + double-buffered streamed blocks; keep the
    # requested scoped limit <= 64 MiB so the same setting is valid on v7x.
    vmem_need = (w_in_p.size * itm + w_p.size * itm + b_p.size * 4
                 + 3 * b_tile * hid_p * 4              # u0 block, u_out block, scratch
                 + 2 * b_tile * in_p * itm             # x_t double buffer
                 + 2 * b_tile * hid_p * 4)             # r_t double buffer
    vmem_limit = int(min(64 * 1024 * 1024, max(32 * 1024 * 1024, 2 * vmem_need)))

    r_seq_p, u_final_p = pl.pallas_call(
        kernel,
        out_shape=(
            jax.ShapeDtypeStruct((T, Bp, hid_p), jnp.float32),
            jax.ShapeDtypeStruct((Bp, hid_p), jnp.float32),
        ),
        grid_spec=pltpu.PrefetchScalarGridSpec(
            num_scalar_prefetch=0,
            grid=(nb, T),                              # time = last (sequential) axis
            in_specs=[
                pl.BlockSpec((1, b_tile, in_p), lambda bi, t: (t, bi, 0)),   # x_t
                pl.BlockSpec((b_tile, hid_p), lambda bi, t: (bi, 0)),        # u0
                pl.BlockSpec((in_p, hid_p), lambda bi, t: (0, 0)),           # W_in
                pl.BlockSpec((hid_p, hid_p), lambda bi, t: (0, 0)),          # W
                pl.BlockSpec((1, hid_p), lambda bi, t: (0, 0)),              # b
            ],
            out_specs=(
                pl.BlockSpec((1, b_tile, hid_p), lambda bi, t: (t, bi, 0)),  # r_t
                pl.BlockSpec((b_tile, hid_p), lambda bi, t: (bi, 0)),        # u_final
            ),
            scratch_shapes=[pltpu.VMEM((b_tile, hid_p), jnp.float32)],
        ),
        compiler_params=pltpu.CompilerParams(
            dimension_semantics=("parallel", "arbitrary"),
            vmem_limit_bytes=vmem_limit,
        ),
        cost_estimate=pl.CostEstimate(
            flops=int(flops),
            transcendentals=int(T * Bp * hid_p),
            bytes_accessed=int(bytes_accessed),
        ),
        # In-place state update: reuse the padded-u0 HBM buffer for u_final.
        input_output_aliases={1: 1},
    )(x_p, u_p, w_in_p, w_p, b_p)

    return r_seq_p[:, :B, :hid_size], u_final_p[:B, :hid_size]


def elman_forward(x, u, w_in, w, b, *, alpha=ALPHA, matmul_dtype=jnp.bfloat16):
    """Module-faithful single step (T=1). Returns (r, u_new)."""
    r_seq, u_new = elman_sequence(x[None], u, w_in, w, b, alpha=alpha,
                                  matmul_dtype=matmul_dtype)
    return r_seq[0], u_new


# ----------------------------- reference & test -----------------------------

def _xavier_uniform(key, shape):
    fan_in, fan_out = shape
    limit = (6.0 / (fan_in + fan_out)) ** 0.5
    return jax.random.uniform(key, shape, jnp.float32, -limit, limit)


def _reference_sequence(x_seq, u0, w_in, w, b, alpha=ALPHA,
                        matmul_dtype=jnp.float32):
    """Pure-JAX reference; matmul_dtype lets us mirror the bf16 MXU path."""
    wd = w.astype(matmul_dtype)
    wind = w_in.astype(matmul_dtype)
    u = u0
    rs = []
    for t in range(x_seq.shape[0]):
        h = jnp.dot(x_seq[t].astype(matmul_dtype), wind,
                    preferred_element_type=jnp.float32)
        pre = jnp.dot(u.astype(matmul_dtype), wd,
                      preferred_element_type=jnp.float32) + b + h
        r = jnp.maximum(jnp.tanh(pre), 0.0)
        u = (1.0 - alpha) * u + alpha * r
        rs.append(r)
    return jnp.stack(rs), u


if __name__ == "__main__":
    B, IN_SIZE, HID_SIZE, T = 8, 16, 32, 8

    key = jax.random.PRNGKey(0)
    k_w, k_win, k_x, k_u = jax.random.split(key, 4)

    # Deterministic parameter init mirroring the module's __init__.
    W = _xavier_uniform(k_w, (HID_SIZE, HID_SIZE))
    b = jnp.zeros((HID_SIZE,), jnp.float32)
    W_in = _xavier_uniform(k_win, (IN_SIZE, HID_SIZE))

    x_seq = jax.random.normal(k_x, (T, B, IN_SIZE), jnp.float32)
    u0 = jax.random.normal(k_u, (B, HID_SIZE), jnp.float32)  # state set via .init(u)

    # --- f32 MXU path: tight check against f32 reference ---
    r32, u32 = elman_sequence(x_seq, u0, W_in, W, b, matmul_dtype=jnp.float32)
    jax.block_until_ready((r32, u32))
    r_ref, u_ref = _reference_sequence(x_seq, u0, W_in, W, b)
    assert jnp.allclose(r32, r_ref, atol=1e-4, rtol=1e-4), "r mismatch (f32)"
    assert jnp.allclose(u32, u_ref, atol=1e-4, rtol=1e-4), "u mismatch (f32)"

    # --- bf16 MXU path (perf default on v6e/v7x): check vs bf16-mirrored ref ---
    rbf, ubf = elman_sequence(x_seq, u0, W_in, W, b, matmul_dtype=jnp.bfloat16)
    jax.block_until_ready((rbf, ubf))
    r_refb, u_refb = _reference_sequence(x_seq, u0, W_in, W, b,
                                         matmul_dtype=jnp.bfloat16)
    assert jnp.allclose(rbf, r_refb, atol=5e-3, rtol=5e-3), "r mismatch (bf16)"
    assert jnp.allclose(ubf, u_refb, atol=5e-3, rtol=5e-3), "u mismatch (bf16)"

    # --- non-unit alpha exercises the leaky-update branch ---
    ra, ua = elman_sequence(x_seq, u0, W_in, W, b, alpha=0.5,
                            matmul_dtype=jnp.float32)
    jax.block_until_ready((ra, ua))
    ra_ref, ua_ref = _reference_sequence(x_seq, u0, W_in, W, b, alpha=0.5)
    assert jnp.allclose(ra, ra_ref, atol=1e-4, rtol=1e-4), "r mismatch (alpha=0.5)"
    assert jnp.allclose(ua, ua_ref, atol=1e-4, rtol=1e-4), "u mismatch (alpha=0.5)"

    # --- module-faithful single step ---
    r1, u1 = elman_forward(x_seq[0], u0, W_in, W, b, matmul_dtype=jnp.float32)
    jax.block_until_ready((r1, u1))
    assert jnp.allclose(r1, r_ref[0], atol=1e-4, rtol=1e-4), "r mismatch (1-step)"

    print("KERNEL_OK")
</pallas_src>

<mosaic_0001>
module attributes {stable_mosaic.version = 11 : i64} {
  func.func @_elman_seq_kernel(%arg0: i32, %arg1: i32, %arg2: memref<1x8x128xf32, #tpu.memory_space<vmem>>, %arg3: memref<8x128xf32, #tpu.memory_space<vmem>>, %arg4: memref<128x128xf32, #tpu.memory_space<vmem>>, %arg5: memref<128x128xf32, #tpu.memory_space<vmem>>, %arg6: memref<1x128xf32, #tpu.memory_space<vmem>>, %arg7: memref<1x8x128xf32, #tpu.memory_space<vmem>>, %arg8: memref<8x128xf32, #tpu.memory_space<vmem>>, %arg9: memref<8x128xf32, #tpu.memory_space<vmem>>) attributes {dimension_semantics = [#tpu.dimension_semantics<parallel>, #tpu.dimension_semantics<arbitrary>], iteration_bounds = array<i64: 1, 8>, scalar_prefetch = 0 : i64, scratch_operands = 1 : i64, tpu.core_type = #tpu.core_type<tc>, window_params = [{transform_indices = @transform_0, window_bounds = array<i64: 1, 8, 128>}, {transform_indices = @transform_1, window_bounds = array<i64: 8, 128>}, {pipeline_mode = #tpu.pipeline_mode<synchronous>, transform_indices = @transform_2, window_bounds = array<i64: 128, 128>}, {pipeline_mode = #tpu.pipeline_mode<synchronous>, transform_indices = @transform_3, window_bounds = array<i64: 128, 128>}, {pipeline_mode = #tpu.pipeline_mode<synchronous>, transform_indices = @transform_4, window_bounds = array<i64: 1, 128>}, {transform_indices = @transform_5, window_bounds = array<i64: 1, 8, 128>}, {transform_indices = @transform_6, window_bounds = array<i64: 8, 128>}]} {
    %c0_i32 = arith.constant 0 : i32
    %0 = arith.cmpi eq, %arg1, %c0_i32 : i32
    %1 = arith.extui %0 : i1 to i32
    %c0_i32_0 = arith.constant 0 : i32
    %2 = arith.cmpi ne, %1, %c0_i32_0 : i32
    scf.if %2 {
      %c0_19 = arith.constant 0 : index
      %c0_20 = arith.constant 0 : index
      %24 = vector.load %arg3[%c0_19, %c0_20] : memref<8x128xf32, #tpu.memory_space<vmem>>, vector<8x128xf32>
      %c0_21 = arith.constant 0 : index
      %c0_22 = arith.constant 0 : index
      %25 = vector.load %arg9[%c0_21, %c0_22] : memref<8x128xf32, #tpu.memory_space<vmem>>, vector<8x128xf32>
      tpu.vector_store %arg9[%c0_21, %c0_22], %24 {strides = array<i32>} : memref<8x128xf32, #tpu.memory_space<vmem>>, vector<8x128xf32>,
    } else {
    }
    %c0 = arith.constant 0 : index
    %c0_1 = arith.constant 0 : index
    %c0_2 = arith.constant 0 : index
    %3 = vector.load %arg2[%c0, %c0_1, %c0_2] : memref<1x8x128xf32, #tpu.memory_space<vmem>>, vector<1x8x128xf32>
    %4 = vector.shape_cast %3 : vector<1x8x128xf32> to vector<8x128xf32>
    %c0_3 = arith.constant 0 : index
    %c0_4 = arith.constant 0 : index
    %5 = vector.load %arg9[%c0_3, %c0_4] : memref<8x128xf32, #tpu.memory_space<vmem>>, vector<8x128xf32>
    %c0_5 = arith.constant 0 : index
    %c0_6 = arith.constant 0 : index
    %6 = vector.load %arg5[%c0_5, %c0_6] : memref<128x128xf32, #tpu.memory_space<vmem>>, vector<128x128xf32>
    %cst = arith.constant dense<0.000000e+00> : vector<8x128xf32>
    %7 = tpu.matmul %5, %6, %cst {dimension_numbers = #tpu.dot_dimension_numbers<[1], [0], [0], [1], [0, 0, 1, 1], [], []>} : vector<8x128xf32>, vector<128x128xf32>, vector<8x128xf32> -> vector<8x128xf32>
    %c0_7 = arith.constant 0 : index
    %c0_8 = arith.constant 0 : index
    %8 = vector.load %arg4[%c0_7, %c0_8] : memref<128x128xf32, #tpu.memory_space<vmem>>, vector<128x128xf32>
    %cst_9 = arith.constant dense<0.000000e+00> : vector<8x128xf32>
    %9 = tpu.matmul %4, %8, %cst_9 {dimension_numbers = #tpu.dot_dimension_numbers<[1], [0], [0], [1], [0, 0, 1, 1], [], []>} : vector<8x128xf32>, vector<128x128xf32>, vector<8x128xf32> -> vector<8x128xf32>
    %10 = arith.addf %7, %9 : vector<8x128xf32>
    %c0_10 = arith.constant 0 : index
    %c0_11 = arith.constant 0 : index
    %11 = vector.load %arg6[%c0_10, %c0_11] : memref<1x128xf32, #tpu.memory_space<vmem>>, vector<1x128xf32>
    %12 = vector.broadcast %11 : vector<1x128xf32> to vector<8x128xf32>
    %13 = arith.addf %10, %12 : vector<8x128xf32>
    %14 = math.tanh %13 : vector<8x128xf32>
    %cst_12 = arith.constant 0.000000e+00 : f32
    %15 = vector.broadcast %cst_12 : f32 to vector<8x128xf32>
    %16 = arith.maximumf %14, %15 : vector<8x128xf32>
    %c0_13 = arith.constant 0 : index
    %c0_14 = arith.constant 0 : index
    %17 = vector.load %arg9[%c0_13, %c0_14] : memref<8x128xf32, #tpu.memory_space<vmem>>, vector<8x128xf32>
    tpu.vector_store %arg9[%c0_13, %c0_14], %16 {strides = array<i32>} : memref<8x128xf32, #tpu.memory_space<vmem>>, vector<8x128xf32>,
    %c0_15 = arith.constant 0 : index
    %c0_16 = arith.constant 0 : index
    %c0_17 = arith.constant 0 : index
    %18 = vector.load %arg7[%c0_15, %c0_16, %c0_17] : memref<1x8x128xf32, #tpu.memory_space<vmem>>, vector<1x8x128xf32>
    %19 = vector.shape_cast %18 : vector<1x8x128xf32> to vector<8x128xf32>
    %20 = vector.shape_cast %16 : vector<8x128xf32> to vector<1x8x128xf32>
    tpu.vector_store %arg7[%c0_15, %c0_16, %c0_17], %20 {strides = array<i32>} : memref<1x8x128xf32, #tpu.memory_space<vmem>>, vector<1x8x128xf32>,
    %c7_i32 = arith.constant 7 : i32
    %21 = arith.cmpi eq, %arg1, %c7_i32 : i32
    %22 = arith.extui %21 : i1 to i32
    %c0_i32_18 = arith.constant 0 : i32
    %23 = arith.cmpi ne, %22, %c0_i32_18 : i32
    scf.if %23 {
      %c0_19 = arith.constant 0 : index
      %c0_20 = arith.constant 0 : index
      %24 = vector.load %arg9[%c0_19, %c0_20] : memref<8x128xf32, #tpu.memory_space<vmem>>, vector<8x128xf32>
      %c0_21 = arith.constant 0 : index
      %c0_22 = arith.constant 0 : index
      %25 = vector.load %arg8[%c0_21, %c0_22] : memref<8x128xf32, #tpu.memory_space<vmem>>, vector<8x128xf32>
      tpu.vector_store %arg8[%c0_21, %c0_22], %24 {strides = array<i32>} : memref<8x128xf32, #tpu.memory_space<vmem>>, vector<8x128xf32>,
    } else {
    }
    return
  }
  func.func @transform_0(%arg0: i32, %arg1: i32) -> (i32, i32, i32) {
    %c0_i32 = arith.constant 0 : i32
    %c0_i32_0 = arith.constant 0 : i32
    return %arg1, %arg0, %c0_i32 : i32, i32, i32
  }
  func.func @transform_1(%arg0: i32, %arg1: i32) -> (i32, i32) {
    %c0_i32 = arith.constant 0 : i32
    %c0_i32_0 = arith.constant 0 : i32
    return %arg0, %c0_i32 : i32, i32
  }
  func.func @transform_2(%arg0: i32, %arg1: i32) -> (i32, i32) {
    %c0_i32 = arith.constant 0 : i32
    %c0_i32_0 = arith.constant 0 : i32
    %c0_i32_1 = arith.constant 0 : i32
    return %c0_i32, %c0_i32_0 : i32, i32
  }
  func.func @transform_3(%arg0: i32, %arg1: i32) -> (i32, i32) {
    %c0_i32 = arith.constant 0 : i32
    %c0_i32_0 = arith.constant 0 : i32
    %c0_i32_1 = arith.constant 0 : i32
    return %c0_i32, %c0_i32_0 : i32, i32
  }
  func.func @transform_4(%arg0: i32, %arg1: i32) -> (i32, i32) {
    %c0_i32 = arith.constant 0 : i32
    %c0_i32_0 = arith.constant 0 : i32
    %c0_i32_1 = arith.constant 0 : i32
    return %c0_i32, %c0_i32_0 : i32, i32
  }
  func.func @transform_5(%arg0: i32, %arg1: i32) -> (i32, i32, i32) {
    %c0_i32 = arith.constant 0 : i32
    %c0_i32_0 = arith.constant 0 : i32
    return %arg1, %arg0, %c0_i32 : i32, i32, i32
  }
  func.func @transform_6(%arg0: i32, %arg1: i32) -> (i32, i32) {
    %c0_i32 = arith.constant 0 : i32
    %c0_i32_0 = arith.constant 0 : i32
    return %arg0, %c0_i32 : i32, i32
  }
}

</mosaic_0001>

<llo_original>
// kernel: tpu_custom_call.1
$region0: #{tpu_custom_call.1}
  #allocation0 [shape = 'u32[]', space=smem, size = 0x4, offset = 0x4, fixed_abs, tag = 'smem constant byte address 0x4 - core index']
  #allocation1 [shape = 'u32[72,128]{1,0:T(1,128)}', space=vmem, size = 0x9000, scoped, tag = 'internal scratch']
  #allocation2 [shape = 'f32[8,128]{1,0:T(8,128)}', space=vmem, size = 0x1000, scoped, tag = 'scratch operand']
  %s0 = inlined_call_operand.hbm [shape: f32[8,8,128], index: 0, kind: input, shape index: {}]
  %s1 = inlined_call_operand.hbm [shape: f32[8,128], index: 1, kind: input, shape index: {}, may-alias: {1,6}]
  %s2 = inlined_call_operand.hbm [shape: f32[128,128], index: 2, kind: input, shape index: {}]
  %s3 = inlined_call_operand.hbm [shape: f32[128,128], index: 3, kind: input, shape index: {}]
  %s4 = inlined_call_operand.vmem [shape: f32[1,128], index: 4, kind: input, shape index: {}]
  %s5 = inlined_call_operand.hbm [shape: f32[8,8,128], index: 5, kind: output, shape index: {0}]
  %s6 = inlined_call_operand.hbm [shape: f32[8,128], index: 6, kind: output, shape index: {1}, may-alias: {1,6}]
  %7 = xla_tuple %s5, %s6
  %s8 = sld [smem:[#allocation0]]
  $region85: #{tpu_custom_call.1} parent=0
    _
  %s10 = ssub.s32 1, %s8
  %s11 = scalar_select 0, %s10, %s8
  $region1: #{tpu_custom_call.1} parent=0
    #allocation3 [shape = 'u8[8192]{0}', space=vmem, size = 0x2000, scoped, tag = 'input window, operand 0']
    #allocation4 [shape = 's32[2]{0}', space=sflag, size = 0x8, scoped, tag = 'scoped memory for tpu_custom_call.1']
    #allocation5 [shape = 's32[2]{0}', space=sflag, size = 0x8, scoped, tag = 'scoped memory for tpu_custom_call.1']
    #allocation6 [shape = 'u8[4096]{0}', space=vmem, size = 0x1000, scoped, tag = 'input window, operand 1, single buffered']
    #allocation7 [shape = 's32[1]{0}', space=sflag, size = 0x4, scoped, tag = 'scoped memory for tpu_custom_call.1']
    #allocation8 [shape = 'u8[65536]{0}', space=vmem, size = 0x10000, scoped, tag = 'input window, operand 2, single buffered']
    #allocation9 [shape = 'u8[65536]{0}', space=vmem, size = 0x10000, scoped, tag = 'input window, operand 3, single buffered']
    #allocation10 [shape = 's32[1]{0}', space=sflag, size = 0x4, scoped, tag = 'scoped memory for tpu_custom_call.1']
    #allocation11 [shape = 'u8[8192]{0}', space=vmem, size = 0x2000, scoped, tag = 'output window, operand 0']
    #allocation12 [shape = 'u8[4096]{0}', space=vmem, size = 0x1000, scoped, tag = 'output window, operand 1, single buffered']
    #allocation13 [shape = 's32[1]{0}', space=sflag, size = 0x4, scoped, tag = 'scoped memory for tpu_custom_call.1']
    %12 = vsyncpa [#allocation4], 0
    %s13 = scalar_lea.sflag [#allocation4], 1
    %14 = vsyncpa %s13, 0
    %15 = vsyncpa [#allocation7], 0
    %16 = vsyncpa [#allocation10], 0
    %17 = vsyncpa [#allocation5], 0
    %s18 = scalar_lea.sflag [#allocation5], 1
    %19 = vsyncpa %s18, 0
    %20 = vsyncpa [#allocation13], 0
    loop: start=0, step=1, limit=10
    $region2: #{tpu_custom_call.1} parent=1 // loop_pre_header
      _
    $region3: #{tpu_custom_call.1} parent=1 // loop_header
      %s22 = sphi 0, %s26
      %p23 = scmp.ge.s32.totalorder %s22, 10
      %s29 = sphi 0, %s41
      %s30 = sphi 0, %s37
      %s31 = sphi 0, %s29
      %s32 = sphi 0, %s30
      %s33 = sphi 0, %s31
      %s34 = sphi 0, %s32
      %s46 = sphi 0, %s48
      %s49 = sphi 0, %s46
      %s50 = sphi 0, %s49
      %s66 = sphi 0, %s50
      %s72 = sphi 0, %s74
      %s75 = sphi 0, %s72
      %s76 = sphi 0, %s75
      %s92 = sphi 0, %s76
      %s96 = sphi 0, %s96
      %s98 = sphi 0, %s96
      %s99 = sphi 0, %s98
      %s113 = sphi 0, %s99
      %s117 = sphi 0, %s117
      %s119 = sphi 0, %s117
      %s120 = sphi 0, %s119
      %s134 = sphi 0, %s120
      %s138 = sphi 0, %s138
      %s140 = sphi 0, %s138
      %s141 = sphi 0, %s140
      %s155 = sphi 0, %s141
      %s163 = sphi 0, %s165
      %s166 = sphi 0, %s163
      %s167 = sphi 0, %s166
      %s183 = sphi 0, %s167
      %s189 = sphi 0, %s191
      %s192 = sphi 0, %s189
      %s193 = sphi 0, %s192
      %s209 = sphi 0, %s193
    $region4: #{tpu_custom_call.1} parent=1 // loop_header_branch
      %25 = sbr.rel (%p23) target = $region8
    $region5: #{tpu_custom_call.1} parent=1 // loop_body
      %s27 = ssub.s32 %s22, 1
      %s28 = ssub.s32 %s22, 2
      %s35 = sadd.s32 1, %s30
      %p36 = scmp.ge.s32.totalorder %s35, 8
      %s37 = scalar_select %p36, 0, %s35
      %s38 = sadd.s32 1, %s29
      %s39 = scalar_select %p36, %s38, %s29
      %p40 = scmp.ge.s32.totalorder %s39, 1
      %s41 = scalar_select %p40, 0, %s39
      %s42 = ssub.s32 %s30, %s37
      %s43 = ssub.s32 %s29, %s41
      %s44 = sor.u32 %s42, %s43
      %p45 = scmp.eq.s32.totalorder %s44, 0
      %s47 = sadd.s32 %s46, 1
      %s48 = scalar_select %p45, %s46, %s47
      %p51 = pneg %p45
      %p52 = scmp.eq.s32.totalorder %s22, 7
      %p53 = por %p51, %p52
      %p54 = scmp.ne.s32.totalorder %s46, %s49
      %p55 = scmp.eq.s32.totalorder %s22, 0
      %p56 = por %p54, %p55
      %p57 = scmp.ne.s32.totalorder %s46, %s49
      %p58 = scmp.eq.s32.totalorder %s27, 7
      %p59 = por %p57, %p58
      %p60 = scmp.ne.s32.totalorder %s49, %s50
      %p61 = scmp.eq.s32.totalorder %s27, 0
      %p62 = por %p60, %p61
      %p63 = scmp.ne.s32.totalorder %s49, %s50
      %p64 = scmp.eq.s32.totalorder %s28, 7
      %p65 = por %p63, %p64
      %p67 = scmp.ne.s32.totalorder %s50, %s66
      %p68 = scmp.eq.s32.totalorder %s28, 0
      %p69 = por %p67, %p68
      %s70 = ssub.s32 %s29, %s41
      %p71 = scmp.eq.s32.totalorder %s70, 0
      %s73 = sadd.s32 %s72, 1
      %s74 = scalar_select %p71, %s72, %s73
      %p77 = pneg %p71
      %p78 = scmp.eq.s32.totalorder %s22, 7
      %p79 = por %p77, %p78
      %p80 = scmp.ne.s32.totalorder %s72, %s75
      %p81 = scmp.eq.s32.totalorder %s22, 0
      %p82 = por %p80, %p81
      %p83 = scmp.ne.s32.totalorder %s72, %s75
      %p84 = scmp.eq.s32.totalorder %s27, 7
      %p85 = por %p83, %p84
      %p86 = scmp.ne.s32.totalorder %s75, %s76
      %p87 = scmp.eq.s32.totalorder %s27, 0
      %p88 = por %p86, %p87
      %p89 = scmp.ne.s32.totalorder %s75, %s76
      %p90 = scmp.eq.s32.totalorder %s28, 7
      %p91 = por %p89, %p90
      %p93 = scmp.ne.s32.totalorder %s76, %s92
      %p94 = scmp.eq.s32.totalorder %s28, 0
      %p95 = por %p93, %p94
      %s97 = sadd.s32 %s96, 1
      %p100 = scmp.eq.s32.totalorder %s22, 7
      %p101 = scmp.ne.s32.totalorder %s96, %s98
      %p102 = scmp.eq.s32.totalorder %s22, 0
      %p103 = por %p101, %p102
      %p104 = scmp.ne.s32.totalorder %s96, %s98
      %p105 = scmp.eq.s32.totalorder %s27, 7
      %p106 = por %p104, %p105
      %p107 = scmp.ne.s32.totalorder %s98, %s99
      %p108 = scmp.eq.s32.totalorder %s27, 0
      %p109 = por %p107, %p108
      %p110 = scmp.ne.s32.totalorder %s98, %s99
      %p111 = scmp.eq.s32.totalorder %s28, 7
      %p112 = por %p110, %p111
      %p114 = scmp.ne.s32.totalorder %s99, %s113
      %p115 = scmp.eq.s32.totalorder %s28, 0
      %p116 = por %p114, %p115
      %s118 = sadd.s32 %s117, 1
      %p121 = scmp.eq.s32.totalorder %s22, 7
      %p122 = scmp.ne.s32.totalorder %s117, %s119
      %p123 = scmp.eq.s32.totalorder %s22, 0
      %p124 = por %p122, %p123
      %p125 = scmp.ne.s32.totalorder %s117, %s119
      %p126 = scmp.eq.s32.totalorder %s27, 7
      %p127 = por %p125, %p126
      %p128 = scmp.ne.s32.totalorder %s119, %s120
      %p129 = scmp.eq.s32.totalorder %s27, 0
      %p130 = por %p128, %p129
      %p131 = scmp.ne.s32.totalorder %s119, %s120
      %p132 = scmp.eq.s32.totalorder %s28, 7
      %p133 = por %p131, %p132
      %p135 = scmp.ne.s32.totalorder %s120, %s134
      %p136 = scmp.eq.s32.totalorder %s28, 0
      %p137 = por %p135, %p136
      %s139 = sadd.s32 %s138, 1
      %p142 = scmp.eq.s32.totalorder %s22, 7
      %p143 = scmp.ne.s32.totalorder %s138, %s140
      %p144 = scmp.eq.s32.totalorder %s22, 0
      %p145 = por %p143, %p144
      %p146 = scmp.ne.s32.totalorder %s138, %s140
      %p147 = scmp.eq.s32.totalorder %s27, 7
      %p148 = por %p146, %p147
      %p149 = scmp.ne.s32.totalorder %s140, %s141
      %p150 = scmp.eq.s32.totalorder %s27, 0
      %p151 = por %p149, %p150
      %p152 = scmp.ne.s32.totalorder %s140, %s141
      %p153 = scmp.eq.s32.totalorder %s28, 7
      %p154 = por %p152, %p153
      %p156 = scmp.ne.s32.totalorder %s141, %s155
      %p157 = scmp.eq.s32.totalorder %s28, 0
      %p158 = por %p156, %p157
      %s159 = ssub.s32 %s30, %s37
      %s160 = ssub.s32 %s29, %s41
      %s161 = sor.u32 %s159, %s160
      %p162 = scmp.eq.s32.totalorder %s161, 0
      %s164 = sadd.s32 %s163, 1
      %s165 = scalar_select %p162, %s163, %s164
      %p168 = pneg %p162
      %p169 = scmp.eq.s32.totalorder %s22, 7
      %p170 = por %p168, %p169
      %p171 = scmp.ne.s32.totalorder %s163, %s166
      %p172 = scmp.eq.s32.totalorder %s22, 0
      %p173 = por %p171, %p172
      %p174 = scmp.ne.s32.totalorder %s163, %s166
      %p175 = scmp.eq.s32.totalorder %s27, 7
      %p176 = por %p174, %p175
      %p177 = scmp.ne.s32.totalorder %s166, %s167
      %p178 = scmp.eq.s32.totalorder %s27, 0
      %p179 = por %p177, %p178
      %p180 = scmp.ne.s32.totalorder %s166, %s167
      %p181 = scmp.eq.s32.totalorder %s28, 7
      %p182 = por %p180, %p181
      %p184 = scmp.ne.s32.totalorder %s167, %s183
      %p185 = scmp.eq.s32.totalorder %s28, 0
      %p186 = por %p184, %p185
      %s187 = ssub.s32 %s29, %s41
      %p188 = scmp.eq.s32.totalorder %s187, 0
      %s190 = sadd.s32 %s189, 1
      %s191 = scalar_select %p188, %s189, %s190
      %p194 = pneg %p188
      %p195 = scmp.eq.s32.totalorder %s22, 7
      %p196 = por %p194, %p195
      %p197 = scmp.ne.s32.totalorder %s189, %s192
      %p198 = scmp.eq.s32.totalorder %s22, 0
      %p199 = por %p197, %p198
      %p200 = scmp.ne.s32.totalorder %s189, %s192
      %p201 = scmp.eq.s32.totalorder %s27, 7
      %p202 = por %p200, %p201
      %p203 = scmp.ne.s32.totalorder %s192, %s193
      %p204 = scmp.eq.s32.totalorder %s27, 0
      %p205 = por %p203, %p204
      %p206 = scmp.ne.s32.totalorder %s192, %s193
      %p207 = scmp.eq.s32.totalorder %s28, 7
      %p208 = por %p206, %p207
      %p210 = scmp.ne.s32.totalorder %s193, %s209
      %p211 = scmp.eq.s32.totalorder %s28, 0
      %p212 = por %p210, %p211
      %p213 = scmp.le.s32.totalorder 1, %s22
      %p214 = scmp.lt.s32.totalorder %s22, 9
      %p215 = pnand %p213, %p214
      %p216 = pneg %p215
      // Predicated region
      $region9: #{tpu_custom_call.1} parent=5 // pred_check
        _
      $region10: #{tpu_custom_call.1} parent=5 // pred_check_branch
        %218 = sbr.rel (%p215) target = $region12
      $region11: #{tpu_custom_call.1} parent=5 // pred_region
        %s219 = ssub.s32 %s22, 1
        // Predicated region
        $region13: #{tpu_custom_call.1} parent=11 // pred_check
          %p220 = pneg %p88
        $region14: #{tpu_custom_call.1} parent=11 // pred_check_branch
          %222 = sbr.rel (%p220) target = $region16
        $region15: #{tpu_custom_call.1} parent=11 // pred_region
          %224 = vsyncadd [#allocation7], 0
          %s225 = smul.addr %s31, 8
          %s226 = scalar_lea.hbm %s1, %s225
          %s228 = sshll.u32 %s226, 4
          %s229 = int_to_ptr.hbm [resolvable:$true] %s228
          %s230 = sshll.u32 [#allocation6], 4
          %s231 = int_to_ptr.vmem [resolvable:$true] %s230
          %233 = dma.hbm_to_vmem [thread:$0]  %s229, 128, %s231, [#allocation7]
        $region16: #{tpu_custom_call.1} parent=11 // pred_fallthru
          _
        // Predicated region
        $region17: #{tpu_custom_call.1} parent=11 // pred_check
          %p234 = pneg %p109
        $region18: #{tpu_custom_call.1} parent=11 // pred_check_branch
          %236 = sbr.rel (%p234) target = $region20
        $region19: #{tpu_custom_call.1} parent=11 // pred_region
          %238 = vsyncadd [#allocation7], 0
          %s239 = sshll.u32 %s2, 4
          %s240 = int_to_ptr.hbm [resolvable:$true] %s239
          %s241 = sshll.u32 [#allocation8], 4
          %s242 = int_to_ptr.vmem [resolvable:$true] %s241
          %247 = dma.hbm_to_vmem [thread:$0]  %s240, 2048, %s242, [#allocation7], 128, 128, 8
        $region20: #{tpu_custom_call.1} parent=11 // pred_fallthru
          _
        // Predicated region
        $region21: #{tpu_custom_call.1} parent=11 // pred_check
          %p248 = pneg %p130
        $region22: #{tpu_custom_call.1} parent=11 // pred_check_branch
          %250 = sbr.rel (%p248) target = $region24
        $region23: #{tpu_custom_call.1} parent=11 // pred_region
          %252 = vsyncadd [#allocation10], 0
          %s253 = sshll.u32 %s3, 4
          %s254 = int_to_ptr.hbm [resolvable:$true] %s253
          %s255 = sshll.u32 [#allocation9], 4
          %s256 = int_to_ptr.vmem [resolvable:$true] %s255
          %261 = dma.hbm_to_vmem [thread:$0]  %s254, 2048, %s256, [#allocation10], 128, 128, 8
        $region24: #{tpu_custom_call.1} parent=11 // pred_fallthru
          _
        // Predicated region
        $region25: #{tpu_custom_call.1} parent=11 // pred_check
          %p262 = pneg %p151
        $region26: #{tpu_custom_call.1} parent=11 // pred_check_branch
          %264 = sbr.rel (%p262) target = $region28
        $region27: #{tpu_custom_call.1} parent=11 // pred_region
          _
        $region28: #{tpu_custom_call.1} parent=11 // pred_fallthru
          _
      $region12: #{tpu_custom_call.1} parent=5 // pred_fallthru
        _
      %p265 = scmp.lt.s32.totalorder %s22, 8
      // Predicated region
      $region29: #{tpu_custom_call.1} parent=5 // pred_check
        %p266 = pneg %p265
      $region30: #{tpu_custom_call.1} parent=5 // pred_check_branch
        %268 = sbr.rel (%p266) target = $region32
      $region31: #{tpu_custom_call.1} parent=5 // pred_region
        // Predicated region
        $region33: #{tpu_custom_call.1} parent=31 // pred_check
          %p269 = pneg %p56
        $region34: #{tpu_custom_call.1} parent=31 // pred_check_branch
          %271 = sbr.rel (%p269) target = $region36
        $region35: #{tpu_custom_call.1} parent=31 // pred_region
          %s272 = sand.u32 %s46, 1
          %s273 = scalar_lea.sflag [#allocation4], %s272
          %s274 = sand.u32 %s46, 1
          %s275 = smul.addr %s274, 8
          %s276 = scalar_lea.vmem [#allocation3], %s275
          %278 = vsyncadd %s273, 0
          %s279 = sadd.s32 %s29, %s30
          %s280 = smul.addr %s279, 8
          %s281 = scalar_lea.hbm %s0, %s280
          %s283 = sshll.u32 %s281, 4
          %s284 = int_to_ptr.hbm [resolvable:$true] %s283
          %s285 = sshll.u32 %s276, 4
          %s286 = int_to_ptr.vmem [resolvable:$true] %s285
          %288 = dma.hbm_to_vmem [thread:$0]  %s284, 128, %s286, %s273
        $region36: #{tpu_custom_call.1} parent=31 // pred_fallthru
          _
      $region32: #{tpu_custom_call.1} parent=5 // pred_fallthru
        _
      %p289 = scmp.le.s32.totalorder 1, %s22
      %p290 = scmp.lt.s32.totalorder %s22, 9
      %p291 = pnand %p289, %p290
      %p292 = pneg %p291
      // Predicated region
      $region37: #{tpu_custom_call.1} parent=5 // pred_check
        _
      $region38: #{tpu_custom_call.1} parent=5 // pred_check_branch
        %294 = sbr.rel (%p291) target = $region40
      $region39: #{tpu_custom_call.1} parent=5 // pred_region
        %s295 = ssub.s32 %s22, 1
        %s296 = sand.u32 %s49, 1
        %s297 = scalar_lea.sflag [#allocation4], %s296
        %s298 = sand.u32 %s49, 1
        %s299 = smul.addr %s298, 8
        %s300 = scalar_lea.vmem [#allocation3], %s299
        // Predicated region
        $region41: #{tpu_custom_call.1} parent=39 // pred_check
          %p301 = pneg %p62
        $region42: #{tpu_custom_call.1} parent=39 // pred_check_branch
          %303 = sbr.rel (%p301) target = $region44
        $region43: #{tpu_custom_call.1} parent=39 // pred_region
          %305 = dma.done %s297, 128
        $region44: #{tpu_custom_call.1} parent=39 // pred_fallthru
          _
        // Predicated region
        $region45: #{tpu_custom_call.1} parent=39 // pred_check
          %p306 = pneg %p88
        $region46: #{tpu_custom_call.1} parent=39 // pred_check_branch
          %308 = sbr.rel (%p306) target = $region48
        $region47: #{tpu_custom_call.1} parent=39 // pred_region
          %310 = dma.done [#allocation7], 128
        $region48: #{tpu_custom_call.1} parent=39 // pred_fallthru
          _
        // Predicated region
        $region49: #{tpu_custom_call.1} parent=39 // pred_check
          %p311 = pneg %p109
        $region50: #{tpu_custom_call.1} parent=39 // pred_check_branch
          %313 = sbr.rel (%p311) target = $region52
        $region51: #{tpu_custom_call.1} parent=39 // pred_region
          %315 = dma.done [#allocation7], 2048
        $region52: #{tpu_custom_call.1} parent=39 // pred_fallthru
          _
        // Predicated region
        $region53: #{tpu_custom_call.1} parent=39 // pred_check
          %p316 = pneg %p130
        $region54: #{tpu_custom_call.1} parent=39 // pred_check_branch
          %318 = sbr.rel (%p316) target = $region56
        $region55: #{tpu_custom_call.1} parent=39 // pred_region
          %320 = dma.done [#allocation10], 2048
        $region56: #{tpu_custom_call.1} parent=39 // pred_fallthru
          _
        %s321 = sand.u32 %s49, 1
        %s322 = scalar_lea.sflag [#allocation4], %s321
        %s323 = sand.u32 %s49, 1
        %s324 = smul.addr %s323, 8
        %s325 = scalar_lea.vmem [#allocation3], %s324
        %p326 = pneg %p62
        %p327 = pneg %p59
        %p328 = pneg %p88
        %p329 = pneg %p85
        %p330 = pneg %p109
        %p331 = pneg %p106
        %p332 = pneg %p130
        %p333 = pneg %p127
        %p334 = pneg %p151
        %p335 = pneg %p148
        %p336 = pneg %p179
        %p337 = pneg %p176
        %s338 = sand.u32 %s166, 1
        %s339 = scalar_lea.sflag [#allocation5], %s338
        %s340 = sand.u32 %s166, 1
        %s341 = smul.addr %s340, 8
        %s342 = scalar_lea.vmem [#allocation11], %s341
        %p343 = pneg %p205
        %p344 = pneg %p202
        %p345 = scmp.eq.s32.totalorder %s32, 0
        // Predicated region
        $region57: #{tpu_custom_call.1} parent=39 // pred_check
          %p346 = pneg %p345
        $region58: #{tpu_custom_call.1} parent=39 // pred_check_branch
          %348 = sbr.rel (%p346) target = $region60
        $region59: #{tpu_custom_call.1} parent=39 // pred_region
          %v349 = vld [vmem:[#allocation6] sm:$0xff]
          %350 = vst [vmem:[#allocation2] sm:$0xff] %v349
        $region60: #{tpu_custom_call.1} parent=39 // pred_fallthru
          _
        %v351 = vld [vmem:[%s300] sm:$0xff]
        %v352 = vld [vmem:[#allocation2] sm:$0xff]
        %v353 = vld [vmem:[#allocation9] sm:$0xff]
        %v354 = vld [vmem:[#allocation9 + $0x8] sm:$0xff]
        %v355 = vld [vmem:[#allocation9 + $0x10] sm:$0xff]
        %v356 = vld [vmem:[#allocation9 + $0x18] sm:$0xff]
        %v357 = vld [vmem:[#allocation9 + $0x20] sm:$0xff]
        %v358 = vld [vmem:[#allocation9 + $0x28] sm:$0xff]
        %v359 = vld [vmem:[#allocation9 + $0x30] sm:$0xff]
        %v360 = vld [vmem:[#allocation9 + $0x38] sm:$0xff]
        %v361 = vld [vmem:[#allocation9 + $0x40] sm:$0xff]
        %v362 = vld [vmem:[#allocation9 + $0x48] sm:$0xff]
        %v363 = vld [vmem:[#allocation9 + $0x50] sm:$0xff]
        %v364 = vld [vmem:[#allocation9 + $0x58] sm:$0xff]
        %v365 = vld [vmem:[#allocation9 + $0x60] sm:$0xff]
        %v366 = vld [vmem:[#allocation9 + $0x68] sm:$0xff]
        %v367 = vld [vmem:[#allocation9 + $0x70] sm:$0xff]
        %v368 = vld [vmem:[#allocation9 + $0x78] sm:$0xff]
        %v369 = vld [vmem:[#allocation8] sm:$0xff]
        %v370 = vld [vmem:[#allocation8 + $0x8] sm:$0xff]
        %v371 = vld [vmem:[#allocation8 + $0x10] sm:$0xff]
        %v372 = vld [vmem:[#allocation8 + $0x18] sm:$0xff]
        %v373 = vld [vmem:[#allocation8 + $0x20] sm:$0xff]
        %v374 = vld [vmem:[#allocation8 + $0x28] sm:$0xff]
        %v375 = vld [vmem:[#allocation8 + $0x30] sm:$0xff]
        %v376 = vld [vmem:[#allocation8 + $0x38] sm:$0xff]
        %v377 = vld [vmem:[#allocation8 + $0x40] sm:$0xff]
        %v378 = vld [vmem:[#allocation8 + $0x48] sm:$0xff]
        %v379 = vld [vmem:[#allocation8 + $0x50] sm:$0xff]
        %v380 = vld [vmem:[#allocation8 + $0x58] sm:$0xff]
        %v381 = vld [vmem:[#allocation8 + $0x60] sm:$0xff]
        %v382 = vld [vmem:[#allocation8 + $0x68] sm:$0xff]
        %v383 = vld [vmem:[#allocation8 + $0x70] sm:$0xff]
        %v384 = vld [vmem:[#allocation8 + $0x78] sm:$0xff]
        %385 = vmatpush.msra.mxu0 %v384
        %386 = vmatpush.msra.mxu0 %v383
        %387 = vmatpush.msra.mxu0 %v382
        %388 = vmatpush.msra.mxu0 %v381
        %389 = vmatpush.msra.mxu0 %v380
        %390 = vmatpush.msra.mxu0 %v379
        %391 = vmatpush.msra.mxu0 %v378
        %392 = vmatpush.msra.mxu0 %v377
        %393 = vmatpush.msra.mxu0 %v376
        %394 = vmatpush.msra.mxu0 %v375
        %395 = vmatpush.msra.mxu0 %v374
        %396 = vmatpush.msra.mxu0 %v373
        %397 = vmatpush.msra.mxu0 %v372
        %398 = vmatpush.msra.mxu0 %v371
        %399 = vmatpush.msra.mxu0 %v370
        %400 = vmatpush.msra.mxu0 %v369
        %401 = vmatmul.f32.gmra.mxu0 %v351
        %v402 = vpop.f32.mrf.mxu0
        %v403 = vadd.f32 0.0, %v402
        %404 = vdwg.mxu0
        %405 = vmatpush.msra.mxu0 %v368
        %406 = vmatpush.msra.mxu0 %v367
        %407 = vmatpush.msra.mxu0 %v366
        %408 = vmatpush.msra.mxu0 %v365
        %409 = vmatpush.msra.mxu0 %v364
        %410 = vmatpush.msra.mxu0 %v363
        %411 = vmatpush.msra.mxu0 %v362
        %412 = vmatpush.msra.mxu0 %v361
        %413 = vmatpush.msra.mxu0 %v360
        %414 = vmatpush.msra.mxu0 %v359
        %415 = vmatpush.msra.mxu0 %v358
        %416 = vmatpush.msra.mxu0 %v357
        %417 = vmatpush.msra.mxu0 %v356
        %418 = vmatpush.msra.mxu0 %v355
        %419 = vmatpush.msra.mxu0 %v354
        %420 = vmatpush.msra.mxu0 %v353
        %421 = vmatmul.f32.gmra.mxu0 %v352
        %v422 = vpop.f32.mrf.mxu0
        %v423 = vadd.f32 %v403, %v422
        %424 = vdwg.mxu0
        %v425 = vld [vmem:[%s4] sm:$0x1]
        %v427 = vperm.slane %v425, 0
        %v429 = vadd.f32 %v423, %v427
        %v430 = vtanh.pop %v429
        %v431 = vmax.f32 %v430, 0.0
        %432 = vst [vmem:[#allocation2] sm:$0xff] %v431
        %433 = vst [vmem:[%s342] sm:$0xff] %v431
        %p434 = scmp.eq.s32.totalorder %s32, 7
        // Predicated region
        $region61: #{tpu_custom_call.1} parent=39 // pred_check
          %p435 = pneg %p434
        $region62: #{tpu_custom_call.1} parent=39 // pred_check_branch
          %437 = sbr.rel (%p435) target = $region64
        $region63: #{tpu_custom_call.1} parent=39 // pred_region
          %v438 = vld [vmem:[#allocation2] sm:$0xff]
          %439 = vst [vmem:[#allocation12] sm:$0xff] %v438
        $region64: #{tpu_custom_call.1} parent=39 // pred_fallthru
          _
        %s440 = sand.u32 %s166, 1
        %s441 = scalar_lea.sflag [#allocation5], %s440
        %s442 = sand.u32 %s166, 1
        %s443 = smul.addr %s442, 8
        %s444 = scalar_lea.vmem [#allocation11], %s443
        // Predicated region
        $region65: #{tpu_custom_call.1} parent=39 // pred_check
          %p445 = pneg %p176
        $region66: #{tpu_custom_call.1} parent=39 // pred_check_branch
          %447 = sbr.rel (%p445) target = $region68
        $region67: #{tpu_custom_call.1} parent=39 // pred_region
          %449 = vsyncadd %s441, 0
          %s450 = sadd.s32 %s31, %s32
          %s451 = smul.addr %s450, 8
          %s452 = scalar_lea.hbm %s5, %s451
          %s454 = sshll.u32 %s444, 4
          %s455 = int_to_ptr.vmem [resolvable:$true] %s454
          %s456 = sshll.u32 %s452, 4
          %s457 = int_to_ptr.hbm [resolvable:$true] %s456
          %459 = dma.vmem_to_hbm [thread:$0]  %s455, 128, %s457, %s441
        $region68: #{tpu_custom_call.1} parent=39 // pred_fallthru
          _
        // Predicated region
        $region69: #{tpu_custom_call.1} parent=39 // pred_check
          %p460 = pneg %p202
        $region70: #{tpu_custom_call.1} parent=39 // pred_check_branch
          %462 = sbr.rel (%p460) target = $region72
        $region71: #{tpu_custom_call.1} parent=39 // pred_region
          %464 = vsyncadd [#allocation13], 0
          %s465 = smul.addr %s31, 8
          %s466 = scalar_lea.hbm %s6, %s465
          %s468 = sshll.u32 [#allocation12], 4
          %s469 = int_to_ptr.vmem [resolvable:$true] %s468
          %s470 = sshll.u32 %s466, 4
          %s471 = int_to_ptr.hbm [resolvable:$true] %s470
          %473 = dma.vmem_to_hbm [thread:$0]  %s469, 128, %s471, [#allocation13]
        $region72: #{tpu_custom_call.1} parent=39 // pred_fallthru
          _
        // Predicated region
        $region73: #{tpu_custom_call.1} parent=39 // pred_check
          %p474 = pneg %p202
        $region74: #{tpu_custom_call.1} parent=39 // pred_check_branch
          %476 = sbr.rel (%p474) target = $region76
        $region75: #{tpu_custom_call.1} parent=39 // pred_region
          %478 = dma.done [#allocation13], 128
        $region76: #{tpu_custom_call.1} parent=39 // pred_fallthru
          _
      $region40: #{tpu_custom_call.1} parent=5 // pred_fallthru
        _
      %p479 = scmp.le.s32.totalorder 2, %s22
      // Predicated region
      $region77: #{tpu_custom_call.1} parent=5 // pred_check
        %p480 = pneg %p479
      $region78: #{tpu_custom_call.1} parent=5 // pred_check_branch
        %482 = sbr.rel (%p480) target = $region80
      $region79: #{tpu_custom_call.1} parent=5 // pred_region
        %s483 = ssub.s32 %s22, 2
        // Predicated region
        $region81: #{tpu_custom_call.1} parent=79 // pred_check
          %p484 = pneg %p182
        $region82: #{tpu_custom_call.1} parent=79 // pred_check_branch
          %486 = sbr.rel (%p484) target = $region84
        $region83: #{tpu_custom_call.1} parent=79 // pred_region
          %s487 = sand.u32 %s167, 1
          %s488 = scalar_lea.sflag [#allocation5], %s487
          %s489 = sand.u32 %s167, 1
          %s490 = smul.addr %s489, 8
          %s491 = scalar_lea.vmem [#allocation11], %s490
          %493 = dma.done %s488, 128
        $region84: #{tpu_custom_call.1} parent=79 // pred_fallthru
          _
      $region80: #{tpu_custom_call.1} parent=5 // pred_fallthru
        _
    $region6: #{tpu_custom_call.1} parent=1 // loop_footer
      %s26 = sadd.s32 1, %s22
    $region7: #{tpu_custom_call.1} parent=1 // loop_footer_branch
      %21 = sbr.rel target = $region3
    $region8: #{tpu_custom_call.1} parent=1 // loop_exit
      _
    %494 = vsyncpa [#allocation4], 1
    %s495 = scalar_lea.sflag [#allocation4], 1
    %496 = vsyncpa %s495, 1
    %497 = vsyncpa [#allocation7], 1
    %498 = vsyncpa [#allocation10], 1
    %499 = vsyncpa [#allocation5], 1
    %s500 = scalar_lea.sflag [#allocation5], 1
    %501 = vsyncpa %s500, 1
    %502 = vsyncpa [#allocation13], 1

</llo_original>
